<compile_context>
chip_gen: v6e
topology: v6e:2x2x1
jax: 0.10.0
libtpu: 0.0.40
codegen_flags: <defaults>
</compile_context>

<pallas_src>
import jax
import jax.numpy as jnp
from jax import lax
from jax.experimental import pallas as pl
from jax.experimental.pallas import tpu as pltpu


# ---------------------------------------------------------------------------
# Pallas kernel: full reverse-diffusion trajectory in one launch
# ---------------------------------------------------------------------------
def _sampler_kernel(coef_ref, w1_ref, w23_ref, temb_ref,
                    x_in_ref, img_ref, noise_ref,
                    x0_ref, seg_ref, x0s_ref,
                    cat_sc):
    """One grid point = one lane tile of the flattened batch*pixels dim.

    coef_ref : SMEM (3*T,)       [coeff1 | coeff2 | sqrt(var)] in sampling order,
                                 sqrt(var)=0 on the time_step==0 entry (noise=0).
    w1_ref   : VMEM (HID, C+Ci)  bf16 fused layer-1 weights, acts on concat(x, img)
    w23_ref  : VMEM (C+S, HID)   bf16 stacked eps + seg heads
    temb_ref : VMEM (T, HID, 1)  f32 timestep-embedding bias columns (sampling order)
    x_in_ref : VMEM (C, tn)      x_T tile
    img_ref  : VMEM (Ci, tn)     conditioning-image tile (resident for all steps)
    noise_ref: VMEM (T, C, tn)   pre-drawn Gaussian noise per sampling step
    x0_ref / x0s_ref : VMEM (C, tn)  raw x_0 / (clip(x_0)+1)*0.5
    seg_ref  : VMEM (S, tn)      seg head output of the LAST step only
    cat_sc   : VMEM (C+Ci, tn) f32 persistent concat buffer: rows [0:C)=x_t, [C:)=img
    """
    C = x_in_ref.shape[0]
    T = noise_ref.shape[0]

    # Initialize the persistent concat buffer once per tile.
    cat_sc[:C, :] = x_in_ref[...]
    cat_sc[C:, :] = img_ref[...]

    def step(g, carry):
        # Sampling order: g -> time_step = T-1-g (tables pre-reversed).
        c1 = coef_ref[g]              # extract(coeff1, t, x.shape)
        c2 = coef_ref[T + g]          # extract(coeff2, t, x.shape)
        sv = coef_ref[2 * T + g]      # sqrt(extract(var, t, x.shape)), 0 at t==0

        x = cat_sc[:C, :]                                             # (C, tn) f32

        # Synthetic stand-in for self.model(x_t, t, image) -> (seg_result, eps):
        # one fused bf16 layer-1 dot on the concat buffer, f32 accumulate,
        # f32 tanh (v5e-safe), stacked eps+seg heads in a single MXU dot.
        cat_b = cat_sc[...].astype(jnp.bfloat16)
        pre = jnp.dot(w1_ref[...], cat_b, preferred_element_type=jnp.float32)
        h = jnp.tanh(pre + temb_ref[g])                                # (HID, tn)
        heads = jnp.dot(w23_ref[...], h.astype(jnp.bfloat16),
                        preferred_element_type=jnp.float32)           # (C+S, tn)
        eps = heads[:C, :]

        # x_{t-1} = coeff1 * x_t - coeff2 * eps + sqrt(var) * noise
        cat_sc[:C, :] = c1 * x - c2 * eps + sv * noise_ref[g]

        @pl.when(g == T - 1)
        def _():
            # Only the final step's seg_result is returned by the reference code.
            seg_ref[...] = heads[C:, :]

        return carry

    lax.fori_loop(0, T, step, 0)

    x0 = cat_sc[:C, :]
    x0_ref[...] = x0
    x0s_ref[...] = (jnp.clip(x0, -1.0, 1.0) + 1.0) * 0.5


def _pick_n_tile(n, cap=2048):
    """Largest multiple-of-128 divisor of n that is <= cap (or n itself if small)."""
    if n <= cap:
        return n
    t = (cap // 128) * 128
    while t >= 128:
        if n % t == 0:
            return t
        t -= 128
    return n


# ---------------------------------------------------------------------------
# Wrapper
# ---------------------------------------------------------------------------
class GaussianDiffusionSamplerPallas:
    """Pallas port of GaussianDiffusionSampler.forward (Algorithm 2)."""

    def __init__(self, beta_1, beta_T, T, model_params):
        betas = jnp.linspace(beta_1, beta_T, T).astype(jnp.float32)
        alphas = 1.0 - betas
        alphas_bar = jnp.cumprod(alphas)
        alphas_bar_prev = jnp.concatenate(
            [jnp.ones((1,), jnp.float32), alphas_bar])[:T]
        self.T = T
        coeff1 = jnp.sqrt(1.0 / alphas)
        coeff2 = coeff1 * (1.0 - alphas) / jnp.sqrt(1.0 - alphas_bar)
        posterior_var = betas * (1.0 - alphas_bar_prev) / (1.0 - alphas_bar)
        # var = cat([posterior_var[1:2], betas[1:]])
        var_table = jnp.concatenate([posterior_var[1:2], betas[1:]])
        # time_step == 0 uses zero noise -> fold that into sqrt(var).
        sqrt_var = jnp.sqrt(var_table).at[0].set(0.0)

        order = jnp.arange(T - 1, -1, -1)   # loop step g  <->  time_step = T-1-g
        # Flat 1-D SMEM table (3*T,): avoids the 128-word last-dim padding of a
        # 2-D (T, 3) SMEM array.
        self.coef_table = jnp.concatenate(
            [coeff1[order], coeff2[order], sqrt_var[order]]).astype(jnp.float32)

        self.params = model_params
        hid = model_params["temb_table"].shape[1]
        # VMEM-resident for the whole trajectory (no per-step DMA); the (HID, 1)
        # column broadcasts over lanes in the sublane-major activation layout.
        # TODO(synk): for large T store this lane-dense (HID, T) and slice on the
        # lane dim per step instead of paying the 128x trailing-dim-1 padding.
        self.temb_table = model_params["temb_table"][order].reshape(
            T, hid, 1).astype(jnp.float32)

    def __call__(self, x_T, image, rng):
        # x_T:   [B, C,  H, W]   (NCHW, like PyTorch)
        # image: [B, Ci, H, W]
        B, C, H, W = x_T.shape
        Ci = image.shape[1]
        N = B * H * W
        HID = self.params["w1"].shape[0]
        S = self.params["w3"].shape[0]
        T = self.T

        # bf16 MXU operands (f32 accumulation); state / elementwise math stays f32.
        w1 = self.params["w1"].astype(jnp.bfloat16)                    # (HID, C+Ci)
        w23 = jnp.concatenate(
            [self.params["w2"], self.params["w3"]], axis=0
        ).astype(jnp.bfloat16)                                         # (C+S, HID)

        # NCHW -> channels-on-sublanes, (batch * pixels)-on-lanes (lane-dense).
        x_flat = jnp.transpose(
            x_T.astype(jnp.float32), (1, 0, 2, 3)).reshape(C, N)
        img_flat = jnp.transpose(
            image.astype(jnp.float32), (1, 0, 2, 3)).reshape(Ci, N)

        # Pre-drawn per-step Gaussian noise; the time_step==0 row is killed by
        # sqrt_var==0, matching the reference `noise = 0` branch.
        # TODO(synk): for large T generate noise in-kernel with the hardware PRNG
        # (pltpu.stateful_normal) to avoid streaming a (T, C, N) table from HBM.
        noise = jax.random.normal(rng, (T, C, N), jnp.float32)

        tn = _pick_n_tile(N)
        grid = (N // tn,)

        sampler = pl.pallas_call(
            _sampler_kernel,
            grid=grid,
            in_specs=[
                pl.BlockSpec(memory_space=pltpu.MemorySpace.SMEM),      # coef (3T,)
                pl.BlockSpec((HID, C + Ci), lambda i: (0, 0)),          # w1 (fused)
                pl.BlockSpec((C + S, HID), lambda i: (0, 0)),           # w2|w3 stack
                pl.BlockSpec((T, HID, 1), lambda i: (0, 0, 0)),         # temb table
                pl.BlockSpec((C, tn), lambda i: (0, i)),                # x_T tile
                pl.BlockSpec((Ci, tn), lambda i: (0, i)),               # image tile
                pl.BlockSpec((T, C, tn), lambda i: (0, 0, i)),          # noise tile
            ],
            out_specs=(
                pl.BlockSpec((C, tn), lambda i: (0, i)),                # x_0 raw
                pl.BlockSpec((S, tn), lambda i: (0, i)),                # seg_result
                pl.BlockSpec((C, tn), lambda i: (0, i)),                # (clip+1)/2
            ),
            out_shape=(
                jax.ShapeDtypeStruct((C, N), jnp.float32),
                jax.ShapeDtypeStruct((S, N), jnp.float32),
                jax.ShapeDtypeStruct((C, N), jnp.float32),
            ),
            scratch_shapes=[pltpu.VMEM((C + Ci, tn), jnp.float32)],
            compiler_params=pltpu.CompilerParams(
                dimension_semantics=("parallel",),
                vmem_limit_bytes=64 * 1024 * 1024),
        )

        # TODO(synk): tqdm / is_main_process progress reporting has no kernel
        # equivalent and is dropped (pure logging).
        x0_flat, seg_flat, x0s_flat = sampler(
            self.coef_table, w1, w23, self.temb_table, x_flat, img_flat, noise)

        def to_nchw(a, ch):
            return jnp.transpose(a.reshape(ch, B, H, W), (1, 0, 2, 3))

        # matches PyTorch: ((clip(x_0,-1,1)+1)*0.5, seg_result, x_0)
        return to_nchw(x0s_flat, C), to_nchw(seg_flat, S), to_nchw(x0_flat, C)


# ---------------------------------------------------------------------------
# Main
# ---------------------------------------------------------------------------
if __name__ == "__main__":
    B, C, Ci, H, W = 2, 4, 4, 16, 16
    HID, S, T = 32, 2, 8
    beta_1, beta_T = 1e-4, 0.02

    key = jax.random.PRNGKey(0)
    k_x, k_img, k_w1, k_w2, k_w3, k_temb, k_noise = jax.random.split(key, 7)

    x_T = jax.random.normal(k_x, (B, C, H, W), jnp.float32)
    image = jax.random.normal(k_img, (B, Ci, H, W), jnp.float32)

    params = {
        "w1": 0.3 * jax.random.normal(k_w1, (HID, C + Ci), jnp.float32),
        "w2": 0.3 * jax.random.normal(k_w2, (C, HID), jnp.float32),
        "w3": 0.3 * jax.random.normal(k_w3, (S, HID), jnp.float32),
        "temb_table": 0.1 * jax.random.normal(k_temb, (T, HID), jnp.float32),
    }

    sampler = GaussianDiffusionSamplerPallas(beta_1, beta_T, T, params)
    x0_scaled, seg_result, x0 = sampler(x_T, image, k_noise)

    jax.block_until_ready((x0_scaled, seg_result, x0))
    assert x0_scaled.shape == (B, C, H, W)
    assert seg_result.shape == (B, S, H, W)
    assert x0.shape == (B, C, H, W)
    assert not bool(jnp.isnan(x0).any()), "nan in tensor."
    assert bool(jnp.all(x0_scaled >= 0.0)) and bool(jnp.all(x0_scaled <= 1.0))
    print("KERNEL_OK")
</pallas_src>

<mosaic_0001>
module attributes {stable_mosaic.version = 11 : i64} {
  func.func @_sampler_kernel(%arg0: i32, %arg1: memref<24xf32, #tpu.memory_space<smem>>, %arg2: memref<32x8xbf16, #tpu.memory_space<vmem>>, %arg3: memref<6x32xbf16, #tpu.memory_space<vmem>>, %arg4: memref<8x32x1xf32, #tpu.memory_space<vmem>>, %arg5: memref<4x512xf32, #tpu.memory_space<vmem>>, %arg6: memref<4x512xf32, #tpu.memory_space<vmem>>, %arg7: memref<8x4x512xf32, #tpu.memory_space<vmem>>, %arg8: memref<4x512xf32, #tpu.memory_space<vmem>>, %arg9: memref<2x512xf32, #tpu.memory_space<vmem>>, %arg10: memref<4x512xf32, #tpu.memory_space<vmem>>, %arg11: memref<8x512xf32, #tpu.memory_space<vmem>>) attributes {dimension_semantics = [#tpu.dimension_semantics<parallel>], iteration_bounds = array<i64: 1>, scalar_prefetch = 0 : i64, scratch_operands = 1 : i64, tpu.core_type = #tpu.core_type<tc>, window_params = [{transform_indices = @transform_0, window_bounds = array<i64: 24>}, {pipeline_mode = #tpu.pipeline_mode<synchronous>, transform_indices = @transform_1, window_bounds = array<i64: 32, 8>}, {pipeline_mode = #tpu.pipeline_mode<synchronous>, transform_indices = @transform_2, window_bounds = array<i64: 6, 32>}, {pipeline_mode = #tpu.pipeline_mode<synchronous>, transform_indices = @transform_3, window_bounds = array<i64: 8, 32, 1>}, {transform_indices = @transform_4, window_bounds = array<i64: 4, 512>}, {transform_indices = @transform_5, window_bounds = array<i64: 4, 512>}, {transform_indices = @transform_6, window_bounds = array<i64: 8, 4, 512>}, {transform_indices = @transform_7, window_bounds = array<i64: 4, 512>}, {transform_indices = @transform_8, window_bounds = array<i64: 2, 512>}, {transform_indices = @transform_9, window_bounds = array<i64: 4, 512>}]} {
    %c0 = arith.constant 0 : index
    %c0_0 = arith.constant 0 : index
    %0 = vector.load %arg5[%c0, %c0_0] : memref<4x512xf32, #tpu.memory_space<vmem>>, vector<4x512xf32>
    %c0_1 = arith.constant 0 : index
    %c0_2 = arith.constant 0 : index
    %1 = vector.load %arg11[%c0_1, %c0_2] : memref<8x512xf32, #tpu.memory_space<vmem>>, vector<4x512xf32>
    tpu.vector_store %arg11[%c0_1, %c0_2], %0 {strides = array<i32>} : memref<8x512xf32, #tpu.memory_space<vmem>>, vector<4x512xf32>,
    %c0_3 = arith.constant 0 : index
    %c0_4 = arith.constant 0 : index
    %2 = vector.load %arg6[%c0_3, %c0_4] : memref<4x512xf32, #tpu.memory_space<vmem>>, vector<4x512xf32>
    %c4 = arith.constant 4 : index
    %c0_5 = arith.constant 0 : index
    %3 = vector.load %arg11[%c4, %c0_5] : memref<8x512xf32, #tpu.memory_space<vmem>>, vector<4x512xf32>
    tpu.vector_store %arg11[%c4, %c0_5], %2 {strides = array<i32>} : memref<8x512xf32, #tpu.memory_space<vmem>>, vector<4x512xf32>,
    %c0_i32 = arith.constant 0 : i32
    %c8_i32 = arith.constant 8 : i32
    %4 = arith.addi %c0_i32, %c8_i32 : i32
    %c1_i32 = arith.constant 1 : i32
    scf.for %arg12 = %c0_i32 to %4 step %c1_i32  : i32 {
      %16 = arith.index_cast %arg12 : i32 to index
      %17 = memref.load %arg1[%16] : memref<24xf32, #tpu.memory_space<smem>>
      %c8_i32_16 = arith.constant 8 : i32
      %18 = arith.addi %c8_i32_16, %arg12 : i32
      %19 = arith.index_cast %18 : i32 to index
      %20 = memref.load %arg1[%19] : memref<24xf32, #tpu.memory_space<smem>>
      %c16_i32 = arith.constant 16 : i32
      %21 = arith.addi %c16_i32, %arg12 : i32
      %22 = arith.index_cast %21 : i32 to index
      %23 = memref.load %arg1[%22] : memref<24xf32, #tpu.memory_space<smem>>
      %c0_17 = arith.constant 0 : index
      %c0_18 = arith.constant 0 : index
      %24 = vector.load %arg11[%c0_17, %c0_18] : memref<8x512xf32, #tpu.memory_space<vmem>>, vector<4x512xf32>
      %c0_19 = arith.constant 0 : index
      %c0_20 = arith.constant 0 : index
      %25 = vector.load %arg11[%c0_19, %c0_20] : memref<8x512xf32, #tpu.memory_space<vmem>>, vector<8x512xf32>
      %26 = arith.truncf %25 : vector<8x512xf32> to vector<8x512xbf16>
      %c0_21 = arith.constant 0 : index
      %c0_22 = arith.constant 0 : index
      %27 = vector.load %arg2[%c0_21, %c0_22] : memref<32x8xbf16, #tpu.memory_space<vmem>>, vector<32x8xbf16>
      %cst_23 = arith.constant dense<0.000000e+00> : vector<32x512xf32>
      %28 = tpu.matmul %27, %26, %cst_23 {dimension_numbers = #tpu.dot_dimension_numbers<[1], [0], [0], [1], [0, 0, 1, 1], [], []>} : vector<32x8xbf16>, vector<8x512xbf16>, vector<32x512xf32> -> vector<32x512xf32>
      %29 = arith.index_cast %arg12 : i32 to index
      %c0_24 = arith.constant 0 : index
      %c0_25 = arith.constant 0 : index
      %30 = vector.load %arg4[%29, %c0_24, %c0_25] : memref<8x32x1xf32, #tpu.memory_space<vmem>>, vector<1x32x1xf32>
      %31 = vector.shape_cast %30 : vector<1x32x1xf32> to vector<32x1xf32>
      %32 = vector.broadcast %31 : vector<32x1xf32> to vector<32x512xf32>
      %33 = arith.addf %28, %32 : vector<32x512xf32>
      %34 = math.tanh %33 : vector<32x512xf32>
      %c0_26 = arith.constant 0 : index
      %c0_27 = arith.constant 0 : index
      %35 = vector.load %arg3[%c0_26, %c0_27] : memref<6x32xbf16, #tpu.memory_space<vmem>>, vector<6x32xbf16>
      %36 = arith.truncf %34 : vector<32x512xf32> to vector<32x512xbf16>
      %cst_28 = arith.constant dense<0.000000e+00> : vector<6x512xf32>
      %37 = tpu.matmul %35, %36, %cst_28 {dimension_numbers = #tpu.dot_dimension_numbers<[1], [0], [0], [1], [0, 0, 1, 1], [], []>} : vector<6x32xbf16>, vector<32x512xbf16>, vector<6x512xf32> -> vector<6x512xf32>
      %38 = vector.extract_strided_slice %37 {offsets = [0, 0], sizes = [4, 512], strides = [1, 1]} : vector<6x512xf32> to vector<4x512xf32>
      %39 = vector.broadcast %17 : f32 to vector<4x512xf32>
      %40 = arith.mulf %39, %24 : vector<4x512xf32>
      %41 = vector.broadcast %20 : f32 to vector<4x512xf32>
      %42 = arith.mulf %41, %38 : vector<4x512xf32>
      %43 = arith.subf %40, %42 : vector<4x512xf32>
      %44 = arith.index_cast %arg12 : i32 to index
      %c0_29 = arith.constant 0 : index
      %c0_30 = arith.constant 0 : index
      %45 = vector.load %arg7[%44, %c0_29, %c0_30] : memref<8x4x512xf32, #tpu.memory_space<vmem>>, vector<1x4x512xf32>
      %46 = vector.shape_cast %45 : vector<1x4x512xf32> to vector<4x512xf32>
      %47 = vector.broadcast %23 : f32 to vector<4x512xf32>
      %48 = arith.mulf %47, %46 : vector<4x512xf32>
      %49 = arith.addf %43, %48 : vector<4x512xf32>
      %c0_31 = arith.constant 0 : index
      %c0_32 = arith.constant 0 : index
      %50 = vector.load %arg11[%c0_31, %c0_32] : memref<8x512xf32, #tpu.memory_space<vmem>>, vector<4x512xf32>
      tpu.vector_store %arg11[%c0_31, %c0_32], %49 {strides = array<i32>} : memref<8x512xf32, #tpu.memory_space<vmem>>, vector<4x512xf32>,
      %c7_i32 = arith.constant 7 : i32
      %51 = arith.cmpi eq, %arg12, %c7_i32 : i32
      %52 = arith.extui %51 : i1 to i32
      %c0_i32_33 = arith.constant 0 : i32
      %53 = arith.cmpi ne, %52, %c0_i32_33 : i32
      scf.if %53 {
        %54 = vector.extract_strided_slice %37 {offsets = [4, 0], sizes = [2, 512], strides = [1, 1]} : vector<6x512xf32> to vector<2x512xf32>
        %c0_34 = arith.constant 0 : index
        %c0_35 = arith.constant 0 : index
        %55 = vector.load %arg9[%c0_34, %c0_35] : memref<2x512xf32, #tpu.memory_space<vmem>>, vector<2x512xf32>
        tpu.vector_store %arg9[%c0_34, %c0_35], %54 {strides = array<i32>} : memref<2x512xf32, #tpu.memory_space<vmem>>, vector<2x512xf32>,
      } else {
      }
    }
    %c8_i32_6 = arith.constant 8 : i32
    %c0_7 = arith.constant 0 : index
    %c0_8 = arith.constant 0 : index
    %5 = vector.load %arg11[%c0_7, %c0_8] : memref<8x512xf32, #tpu.memory_space<vmem>>, vector<4x512xf32>
    %c0_9 = arith.constant 0 : index
    %c0_10 = arith.constant 0 : index
    %6 = vector.load %arg8[%c0_9, %c0_10] : memref<4x512xf32, #tpu.memory_space<vmem>>, vector<4x512xf32>
    tpu.vector_store %arg8[%c0_9, %c0_10], %5 {strides = array<i32>} : memref<4x512xf32, #tpu.memory_space<vmem>>, vector<4x512xf32>,
    %cst = arith.constant -1.000000e+00 : f32
    %cst_11 = arith.constant 1.000000e+00 : f32
    %7 = vector.broadcast %cst : f32 to vector<4x512xf32>
    %8 = arith.maximumf %7, %5 : vector<4x512xf32>
    %9 = vector.broadcast %cst_11 : f32 to vector<4x512xf32>
    %10 = arith.minimumf %9, %8 : vector<4x512xf32>
    %cst_12 = arith.constant 1.000000e+00 : f32
    %11 = vector.broadcast %cst_12 : f32 to vector<4x512xf32>
    %12 = arith.addf %10, %11 : vector<4x512xf32>
    %cst_13 = arith.constant 5.000000e-01 : f32
    %13 = vector.broadcast %cst_13 : f32 to vector<4x512xf32>
    %14 = arith.mulf %12, %13 : vector<4x512xf32>
    %c0_14 = arith.constant 0 : index
    %c0_15 = arith.constant 0 : index
    %15 = vector.load %arg10[%c0_14, %c0_15] : memref<4x512xf32, #tpu.memory_space<vmem>>, vector<4x512xf32>
    tpu.vector_store %arg10[%c0_14, %c0_15], %14 {strides = array<i32>} : memref<4x512xf32, #tpu.memory_space<vmem>>, vector<4x512xf32>,
    return
  }
  func.func @transform_0(%arg0: i32) -> i32 {
    %c0_i32 = arith.constant 0 : i32
    %c0_i32_0 = arith.constant 0 : i32
    return %c0_i32 : i32
  }
  func.func @transform_1(%arg0: i32) -> (i32, i32) {
    %c0_i32 = arith.constant 0 : i32
    %c0_i32_0 = arith.constant 0 : i32
    %c0_i32_1 = arith.constant 0 : i32
    return %c0_i32, %c0_i32_0 : i32, i32
  }
  func.func @transform_2(%arg0: i32) -> (i32, i32) {
    %c0_i32 = arith.constant 0 : i32
    %c0_i32_0 = arith.constant 0 : i32
    %c0_i32_1 = arith.constant 0 : i32
    return %c0_i32, %c0_i32_0 : i32, i32
  }
  func.func @transform_3(%arg0: i32) -> (i32, i32, i32) {
    %c0_i32 = arith.constant 0 : i32
    %c0_i32_0 = arith.constant 0 : i32
    %c0_i32_1 = arith.constant 0 : i32
    %c0_i32_2 = arith.constant 0 : i32
    return %c0_i32, %c0_i32_0, %c0_i32_1 : i32, i32, i32
  }
  func.func @transform_4(%arg0: i32) -> (i32, i32) {
    %c0_i32 = arith.constant 0 : i32
    %c0_i32_0 = arith.constant 0 : i32
    return %c0_i32, %arg0 : i32, i32
  }
  func.func @transform_5(%arg0: i32) -> (i32, i32) {
    %c0_i32 = arith.constant 0 : i32
    %c0_i32_0 = arith.constant 0 : i32
    return %c0_i32, %arg0 : i32, i32
  }
  func.func @transform_6(%arg0: i32) -> (i32, i32, i32) {
    %c0_i32 = arith.constant 0 : i32
    %c0_i32_0 = arith.constant 0 : i32
    %c0_i32_1 = arith.constant 0 : i32
    return %c0_i32, %c0_i32_0, %arg0 : i32, i32, i32
  }
  func.func @transform_7(%arg0: i32) -> (i32, i32) {
    %c0_i32 = arith.constant 0 : i32
    %c0_i32_0 = arith.constant 0 : i32
    return %c0_i32, %arg0 : i32, i32
  }
  func.func @transform_8(%arg0: i32) -> (i32, i32) {
    %c0_i32 = arith.constant 0 : i32
    %c0_i32_0 = arith.constant 0 : i32
    return %c0_i32, %arg0 : i32, i32
  }
  func.func @transform_9(%arg0: i32) -> (i32, i32) {
    %c0_i32 = arith.constant 0 : i32
    %c0_i32_0 = arith.constant 0 : i32
    return %c0_i32, %arg0 : i32, i32
  }
}

</mosaic_0001>

<llo_original>
// kernel: tpu_custom_call.1
$region0: #{tpu_custom_call.1}
  #allocation0 [shape = 'u32[]', space=smem, size = 0x4, offset = 0x4, fixed_abs, tag = 'smem constant byte address 0x4 - core index']
  #allocation1 [shape = 'u32[144,128]{1,0:T(1,128)}', space=vmem, size = 0x12000, scoped, tag = 'internal scratch']
  #allocation2 [shape = 'f32[8,512]{1,0:T(8,128)}', space=vmem, size = 0x4000, scoped, tag = 'scratch operand']
  %s0 = inlined_call_operand.vmem [shape: f32[24], index: 0, kind: input, shape index: {}]
  %s1 = inlined_call_operand.vmem [shape: bf16[32,8], index: 1, kind: input, shape index: {}]
  %s2 = inlined_call_operand.vmem [shape: bf16[6,32], index: 2, kind: input, shape index: {}]
  %s3 = inlined_call_operand.vmem [shape: f32[8,32,1], index: 3, kind: input, shape index: {}]
  %s4 = inlined_call_operand.vmem [shape: f32[4,512], index: 4, kind: input, shape index: {}]
  %s5 = inlined_call_operand.vmem [shape: f32[4,512], index: 5, kind: input, shape index: {}]
  %s6 = inlined_call_operand.vmem [shape: f32[8,4,512], index: 6, kind: input, shape index: {}]
  %s7 = inlined_call_operand.hbm [shape: f32[4,512], index: 7, kind: output, shape index: {0}]
  %s8 = inlined_call_operand.hbm [shape: f32[2,512], index: 8, kind: output, shape index: {1}]
  %s9 = inlined_call_operand.hbm [shape: f32[4,512], index: 9, kind: output, shape index: {2}]
  %10 = xla_tuple %s7, %s8, %s9
  %s11 = sld [smem:[#allocation0]]
  $region69: #{tpu_custom_call.1} parent=0
    _
  %s13 = ssub.s32 1, %s11
  %s14 = scalar_select 0, %s13, %s11
  $region1: #{tpu_custom_call.1} parent=0
    #allocation3 [shape = 'u8[512]{0}', space=smem, size = 0x200, scoped, tag = 'input window, operand 0, single buffered']
    #allocation4 [shape = 's32[1]{0}', space=sflag, size = 0x4, scoped, tag = 'scoped memory for tpu_custom_call.1']
    #allocation5 [shape = 's32[1]{0}', space=sflag, size = 0x4, scoped, tag = 'scoped memory for tpu_custom_call.1']
    #allocation6 [shape = 'u8[8192]{0}', space=vmem, size = 0x2000, scoped, tag = 'output window, operand 0, single buffered']
    #allocation7 [shape = 'u8[4096]{0}', space=vmem, size = 0x1000, scoped, tag = 'output window, operand 1, single buffered']
    #allocation8 [shape = 's32[1]{0}', space=sflag, size = 0x4, scoped, tag = 'scoped memory for tpu_custom_call.1']
    #allocation9 [shape = 'u8[8192]{0}', space=vmem, size = 0x2000, scoped, tag = 'output window, operand 2, single buffered']
    %15 = vsyncpa [#allocation5], 0
    %16 = vsyncpa [#allocation4], 0
    %17 = vsyncpa [#allocation8], 0
    // Predicated region
    $region2: #{tpu_custom_call.1} parent=1 // pred_check
      _
    $region3: #{tpu_custom_call.1} parent=1 // pred_check_branch
      %19 = sbr.rel (0) target = $region5
    $region4: #{tpu_custom_call.1} parent=1 // pred_region
      %s21 = ssub.s32 16, 16
      %22 = vsyncadd [#allocation5], %s21
      %s24 = sshll.u32 %s0, 4
      %s25 = int_to_ptr.vmem [resolvable:$true] %s24
      %27 = dma.vmem_to_smem %s25, 16, [#allocation3], [#allocation5]
    $region5: #{tpu_custom_call.1} parent=1 // pred_fallthru
      _
    // Predicated region
    $region6: #{tpu_custom_call.1} parent=1 // pred_check
      _
    $region7: #{tpu_custom_call.1} parent=1 // pred_check_branch
      %29 = sbr.rel (0) target = $region9
    $region8: #{tpu_custom_call.1} parent=1 // pred_region
      _
    $region9: #{tpu_custom_call.1} parent=1 // pred_fallthru
      _
    // Predicated region
    $region10: #{tpu_custom_call.1} parent=1 // pred_check
      _
    $region11: #{tpu_custom_call.1} parent=1 // pred_check_branch
      %31 = sbr.rel (0) target = $region13
    $region12: #{tpu_custom_call.1} parent=1 // pred_region
      _
    $region13: #{tpu_custom_call.1} parent=1 // pred_fallthru
      _
    // Predicated region
    $region14: #{tpu_custom_call.1} parent=1 // pred_check
      _
    $region15: #{tpu_custom_call.1} parent=1 // pred_check_branch
      %33 = sbr.rel (0) target = $region17
    $region16: #{tpu_custom_call.1} parent=1 // pred_region
      _
    $region17: #{tpu_custom_call.1} parent=1 // pred_fallthru
      _
    // Predicated region
    $region18: #{tpu_custom_call.1} parent=1 // pred_check
      _
    $region19: #{tpu_custom_call.1} parent=1 // pred_check_branch
      %35 = sbr.rel (0) target = $region21
    $region20: #{tpu_custom_call.1} parent=1 // pred_region
      _
    $region21: #{tpu_custom_call.1} parent=1 // pred_fallthru
      _
    // Predicated region
    $region22: #{tpu_custom_call.1} parent=1 // pred_check
      _
    $region23: #{tpu_custom_call.1} parent=1 // pred_check_branch
      %37 = sbr.rel (0) target = $region25
    $region24: #{tpu_custom_call.1} parent=1 // pred_region
      _
    $region25: #{tpu_custom_call.1} parent=1 // pred_fallthru
      _
    // Predicated region
    $region26: #{tpu_custom_call.1} parent=1 // pred_check
      _
    $region27: #{tpu_custom_call.1} parent=1 // pred_check_branch
      %39 = sbr.rel (0) target = $region29
    $region28: #{tpu_custom_call.1} parent=1 // pred_region
      _
    $region29: #{tpu_custom_call.1} parent=1 // pred_fallthru
      _
    // Predicated region
    $region30: #{tpu_custom_call.1} parent=1 // pred_check
      _
    $region31: #{tpu_custom_call.1} parent=1 // pred_check_branch
      %41 = sbr.rel (0) target = $region33
    $region32: #{tpu_custom_call.1} parent=1 // pred_region
      %42 = dma.done [#allocation5], 16
    $region33: #{tpu_custom_call.1} parent=1 // pred_fallthru
      _
    %43 = sfence
    %v45 = vld [vmem:[%s4] sm:$0xff]
    %v46 = vld [vmem:[%s4 + $0x8] sm:$0xff]
    %v49 = vcombine.high %v45, %v45
    %v50 = vcombine.high %v46, %v46
    %53 = vst [vmem:[#allocation2] sm:$0xf] %v45
    %54 = vst [vmem:[#allocation2 + $0x8] sm:$0xf] %v49
    %55 = vst [vmem:[#allocation2 + $0x10] sm:$0xf] %v46
    %56 = vst [vmem:[#allocation2 + $0x18] sm:$0xf] %v50
    %v57 = vld [vmem:[%s5] sm:$0xff]
    %v58 = vld [vmem:[%s5 + $0x8] sm:$0xff]
    %v61 = vcombine.low %v57, %v57
    %v62 = vcombine.low %v58, %v58
    %65 = vst [vmem:[#allocation2] sm:$0xf0] %v61
    %66 = vst [vmem:[#allocation2 + $0x8] sm:$0xf0] %v57
    %67 = vst [vmem:[#allocation2 + $0x10] sm:$0xf0] %v62
    %68 = vst [vmem:[#allocation2 + $0x18] sm:$0xf0] %v58
    loop: start=0, step=1, limit=8
    $region34: #{tpu_custom_call.1} parent=1 // loop_pre_header
      _
    $region35: #{tpu_custom_call.1} parent=1 // loop_header
      %s70 = sphi 0, %s74
      %p71 = scmp.ge.s32.totalorder %s70, 8
    $region36: #{tpu_custom_call.1} parent=1 // loop_header_branch
      %73 = sbr.rel (%p71) target = $region40
    $region37: #{tpu_custom_call.1} parent=1 // loop_body
      %s75 = sld [smem:[#allocation3 + %s70]]
      %s76 = sadd.s32 %s70, 8
      %s77 = sld [smem:[#allocation3 + %s76]]
      %s78 = sadd.s32 %s70, 16
      %s79 = sld [smem:[#allocation3 + %s78]]
      %v80 = vld [vmem:[#allocation2] sm:$0xf]
      %v81 = vld [vmem:[#allocation2 + $0x8] sm:$0xf]
      %v82 = vld [vmem:[#allocation2 + $0x10] sm:$0xf]
      %v83 = vld [vmem:[#allocation2 + $0x18] sm:$0xf]
      %v84 = vld [vmem:[#allocation2] sm:$0xff]
      %v85 = vld [vmem:[#allocation2 + $0x8] sm:$0xff]
      %v86 = vld [vmem:[#allocation2 + $0x10] sm:$0xff]
      %v87 = vld [vmem:[#allocation2 + $0x18] sm:$0xff]
      %v88 = vpack.c.bf16 %v84, %v84
      %v89 = vpack.c.bf16 %v85, %v85
      %v90 = vpack.c.bf16 %v86, %v86
      %v91 = vpack.c.bf16 %v87, %v87
      %v92 = vld [vmem:[%s1] sm:$0xf]
      %v93 = vld [vmem:[%s1 + $0x4] sm:$0xf]
      %v94 = vld [vmem:[%s1 + $0x8] sm:$0xf]
      %v95 = vld [vmem:[%s1 + $0xc] sm:$0xf]
      %s96 = smul.u32 %s70, 32
      %s97 = scalar_lea.vmem %s3, %s96
      %v98 = vld [vmem:[%s97] sm:$0xff]
      %v99 = vld [vmem:[%s97 + $0x8] sm:$0xff]
      %v100 = vld [vmem:[%s97 + $0x10] sm:$0xff]
      %v101 = vld [vmem:[%s97 + $0x18] sm:$0xff]
      %103 = vset.pattern.permute.xlu0 0
      %104 = vperm.xlu0 %103, %v98
      %v105 = vpop.permute.xlu0 %104
      %108 = vset.pattern.permute.xlu0 0
      %109 = vperm.xlu0 %108, %v99
      %v110 = vpop.permute.xlu0 %109
      %113 = vset.pattern.permute.xlu0 0
      %114 = vperm.xlu0 %113, %v100
      %v115 = vpop.permute.xlu0 %114
      %118 = vset.pattern.permute.xlu0 0
      %119 = vperm.xlu0 %118, %v101
      %v120 = vpop.permute.xlu0 %119
      %v126 = vunpack.c.l.b16 %v92
      %v127 = vunpack.c.l.b16 %v93
      %v128 = vunpack.c.l.b16 %v94
      %v129 = vunpack.c.l.b16 %v95
      %v130 = vpack.c.b16 %v127, %v126
      %v131 = vpack.c.b16 %v129, %v128
      %vm132 = vcmask 64512
      %v134 = vsel %vm132, %v130, 0
      %v137 = vsel %vm132, %v131, 0
      %vm139 = vcmask 1043456
      %v141 = vsel %vm139, %v88, 0
      %v144 = vsel %vm139, %v89, 0
      %v147 = vsel %vm139, %v90, 0
      %v150 = vsel %vm139, %v91, 0
      %152 = vmatprep.subr.bf16.mxu0 0
      %153 = vmatpush1.bf16.msra.mxu0 0
      %154 = vmatprep.subr.bf16.mxu0 0
      %155 = vmatpush1.bf16.msra.mxu0 0
      %156 = vmatprep.subr.bf16.mxu0 0
      %157 = vmatpush1.bf16.msra.mxu0 0
      %158 = vmatprep.subr.bf16.mxu0 0
      %159 = vmatpush1.bf16.msra.mxu0 0
      %160 = vmatprep.subr.bf16.mxu0 0
      %161 = vmatpush1.bf16.msra.mxu0 0
      %162 = vmatprep.subr.bf16.mxu0 0
      %163 = vmatpush1.bf16.msra.mxu0 0
      %164 = vmatprep.subr.bf16.mxu0 0
      %165 = vmatpush1.bf16.msra.mxu0 0
      %166 = vmatprep.subr.bf16.mxu0 %v144
      %167 = vmatpush1.bf16.msra.mxu0 %v141
      %168 = vmatprep.subr.bf16.mxu0 0
      %169 = vmatpush2.bf16.msra.mxu0 0
      %170 = vmatprep.subr.bf16.mxu0 0
      %171 = vmatpush2.bf16.msra.mxu0 0
      %172 = vmatprep.subr.bf16.mxu0 0
      %173 = vmatpush2.bf16.msra.mxu0 0
      %174 = vmatprep.subr.bf16.mxu0 0
      %175 = vmatpush2.bf16.msra.mxu0 0
      %176 = vmatprep.subr.bf16.mxu0 0
      %177 = vmatpush2.bf16.msra.mxu0 0
      %178 = vmatprep.subr.bf16.mxu0 0
      %179 = vmatpush2.bf16.msra.mxu0 0
      %180 = vmatprep.subr.bf16.mxu0 0
      %181 = vmatpush2.bf16.msra.mxu0 0
      %182 = vmatprep.subr.bf16.mxu0 0
      %183 = vmatpush2.bf16.msra.mxu0 0
      %184 = vmatprep.mubr.bf16.mxu0 0
      %185 = vmatmul.mubr.bf16.gmra.mxu0 %v134
      %v186 = vpop.f32.mrf.mxu0
      %v187 = vadd.f32 %v105, %v186
      %v188 = vpop.f32.mrf.mxu0
      %v189 = vadd.f32 %v105, %v188
      %v190 = vpop.f32.mrf.mxu0
      %v191 = vadd.f32 %v110, %v190
      %v192 = vpop.f32.mrf.mxu0
      %v193 = vadd.f32 %v110, %v192
      %194 = vmatprep.mubr.bf16.mxu0 0
      %195 = vmatmul.mubr.bf16.gmra.mxu0 %v137
      %v196 = vpop.f32.mrf.mxu0
      %v197 = vadd.f32 %v115, %v196
      %v198 = vpop.f32.mrf.mxu0
      %v199 = vadd.f32 %v115, %v198
      %v200 = vpop.f32.mrf.mxu0
      %v201 = vadd.f32 %v120, %v200
      %v202 = vpop.f32.mrf.mxu0
      %v203 = vadd.f32 %v120, %v202
      %204 = vdwg.mxu0
      %205 = vmatprep.subr.bf16.mxu0 0
      %206 = vmatpush1.bf16.msra.mxu0 0
      %207 = vmatprep.subr.bf16.mxu0 0
      %208 = vmatpush1.bf16.msra.mxu0 0
      %209 = vmatprep.subr.bf16.mxu0 0
      %210 = vmatpush1.bf16.msra.mxu0 0
      %211 = vmatprep.subr.bf16.mxu0 0
      %212 = vmatpush1.bf16.msra.mxu0 0
      %213 = vmatprep.subr.bf16.mxu0 0
      %214 = vmatpush1.bf16.msra.mxu0 0
      %215 = vmatprep.subr.bf16.mxu0 0
      %216 = vmatpush1.bf16.msra.mxu0 0
      %217 = vmatprep.subr.bf16.mxu0 0
      %218 = vmatpush1.bf16.msra.mxu0 0
      %219 = vmatprep.subr.bf16.mxu0 %v150
      %220 = vmatpush1.bf16.msra.mxu0 %v147
      %221 = vmatprep.subr.bf16.mxu0 0
      %222 = vmatpush2.bf16.msra.mxu0 0
      %223 = vmatprep.subr.bf16.mxu0 0
      %224 = vmatpush2.bf16.msra.mxu0 0
      %225 = vmatprep.subr.bf16.mxu0 0
      %226 = vmatpush2.bf16.msra.mxu0 0
      %227 = vmatprep.subr.bf16.mxu0 0
      %228 = vmatpush2.bf16.msra.mxu0 0
      %229 = vmatprep.subr.bf16.mxu0 0
      %230 = vmatpush2.bf16.msra.mxu0 0
      %231 = vmatprep.subr.bf16.mxu0 0
      %232 = vmatpush2.bf16.msra.mxu0 0
      %233 = vmatprep.subr.bf16.mxu0 0
      %234 = vmatpush2.bf16.msra.mxu0 0
      %235 = vmatprep.subr.bf16.mxu0 0
      %236 = vmatpush2.bf16.msra.mxu0 0
      %237 = vmatprep.mubr.bf16.mxu0 0
      %238 = vmatmul.mubr.bf16.gmra.mxu0 %v134
      %v239 = vpop.f32.mrf.mxu0
      %v240 = vadd.f32 %v105, %v239
      %v241 = vpop.f32.mrf.mxu0
      %v242 = vadd.f32 %v105, %v241
      %v243 = vpop.f32.mrf.mxu0
      %v244 = vadd.f32 %v110, %v243
      %v245 = vpop.f32.mrf.mxu0
      %v246 = vadd.f32 %v110, %v245
      %247 = vmatprep.mubr.bf16.mxu0 0
      %248 = vmatmul.mubr.bf16.gmra.mxu0 %v137
      %v249 = vpop.f32.mrf.mxu0
      %v250 = vadd.f32 %v115, %v249
      %v251 = vpop.f32.mrf.mxu0
      %v252 = vadd.f32 %v115, %v251
      %v253 = vpop.f32.mrf.mxu0
      %v254 = vadd.f32 %v120, %v253
      %v255 = vpop.f32.mrf.mxu0
      %v256 = vadd.f32 %v120, %v255
      %257 = vdwg.mxu0
      %v258 = vtanh.pop %v187
      %v259 = vtanh.pop %v189
      %v260 = vtanh.pop %v240
      %v261 = vtanh.pop %v242
      %v262 = vtanh.pop %v191
      %v263 = vtanh.pop %v193
      %v264 = vtanh.pop %v244
      %v265 = vtanh.pop %v246
      %v266 = vtanh.pop %v197
      %v267 = vtanh.pop %v199
      %v268 = vtanh.pop %v250
      %v269 = vtanh.pop %v252
      %v270 = vtanh.pop %v201
      %v271 = vtanh.pop %v203
      %v272 = vtanh.pop %v254
      %v273 = vtanh.pop %v256
      %v274 = vld [vmem:[%s2] sm:$0x7]
      %v275 = vpack.c.bf16 %v262, %v258
      %v276 = vpack.c.bf16 %v263, %v259
      %v277 = vpack.c.bf16 %v264, %v260
      %v278 = vpack.c.bf16 %v265, %v261
      %v279 = vpack.c.bf16 %v270, %v266
      %v280 = vpack.c.bf16 %v271, %v267
      %v281 = vpack.c.bf16 %v272, %v268
      %v282 = vpack.c.bf16 %v273, %v269
      %vm283 = vcmask 261120
      %v285 = vsel %vm283, %v274, 0
      %287 = vmatprep.subr.bf16.mxu0 0
      %288 = vmatpush1.bf16.msra.mxu0 0
      %289 = vmatprep.subr.bf16.mxu0 0
      %290 = vmatpush1.bf16.msra.mxu0 0
      %291 = vmatprep.subr.bf16.mxu0 0
      %292 = vmatpush1.bf16.msra.mxu0 0
      %293 = vmatprep.subr.bf16.mxu0 0
      %294 = vmatpush1.bf16.msra.mxu0 0
      %295 = vmatprep.subr.bf16.mxu0 0
      %296 = vmatpush1.bf16.msra.mxu0 0
      %297 = vmatprep.subr.bf16.mxu0 0
      %298 = vmatpush1.bf16.msra.mxu0 0
      %299 = vmatprep.subr.bf16.mxu0 %v280
      %300 = vmatpush1.bf16.msra.mxu0 %v279
      %301 = vmatprep.subr.bf16.mxu0 %v276
      %302 = vmatpush1.bf16.msra.mxu0 %v275
      %303 = vmatprep.subr.bf16.mxu0 0
      %304 = vmatpush2.bf16.msra.mxu0 0
      %305 = vmatprep.subr.bf16.mxu0 0
      %306 = vmatpush2.bf16.msra.mxu0 0
      %307 = vmatprep.subr.bf16.mxu0 0
      %308 = vmatpush2.bf16.msra.mxu0 0
      %309 = vmatprep.subr.bf16.mxu0 0
      %310 = vmatpush2.bf16.msra.mxu0 0
      %311 = vmatprep.subr.bf16.mxu0 0
      %312 = vmatpush2.bf16.msra.mxu0 0
      %313 = vmatprep.subr.bf16.mxu0 0
      %314 = vmatpush2.bf16.msra.mxu0 0
      %315 = vmatprep.subr.bf16.mxu0 0
      %316 = vmatpush2.bf16.msra.mxu0 0
      %317 = vmatprep.subr.bf16.mxu0 0
      %318 = vmatpush2.bf16.msra.mxu0 0
      %319 = vmatprep.mubr.bf16.mxu0 0
      %320 = vmatmul.mubr.bf16.gmra.mxu0 %v285
      %v321 = vpop.f32.mrf.mxu0
      %v322 = vadd.f32 0.0, %v321
      %v323 = vpop.f32.mrf.mxu0
      %v324 = vadd.f32 0.0, %v323
      %v325 = vpop.f32.mrf.mxu0
      %v326 = vpop.f32.mrf.mxu0
      %327 = vdwg.mxu0
      %328 = vmatprep.subr.bf16.mxu0 0
      %329 = vmatpush1.bf16.msra.mxu0 0
      %330 = vmatprep.subr.bf16.mxu0 0
      %331 = vmatpush1.bf16.msra.mxu0 0
      %332 = vmatprep.subr.bf16.mxu0 0
      %333 = vmatpush1.bf16.msra.mxu0 0
      %334 = vmatprep.subr.bf16.mxu0 0
      %335 = vmatpush1.bf16.msra.mxu0 0
      %336 = vmatprep.subr.bf16.mxu0 0
      %337 = vmatpush1.bf16.msra.mxu0 0
      %338 = vmatprep.subr.bf16.mxu0 0
      %339 = vmatpush1.bf16.msra.mxu0 0
      %340 = vmatprep.subr.bf16.mxu0 %v282
      %341 = vmatpush1.bf16.msra.mxu0 %v281
      %342 = vmatprep.subr.bf16.mxu0 %v278
      %343 = vmatpush1.bf16.msra.mxu0 %v277
      %344 = vmatprep.subr.bf16.mxu0 0
      %345 = vmatpush2.bf16.msra.mxu0 0
      %346 = vmatprep.subr.bf16.mxu0 0
      %347 = vmatpush2.bf16.msra.mxu0 0
      %348 = vmatprep.subr.bf16.mxu0 0
      %349 = vmatpush2.bf16.msra.mxu0 0
      %350 = vmatprep.subr.bf16.mxu0 0
      %351 = vmatpush2.bf16.msra.mxu0 0
      %352 = vmatprep.subr.bf16.mxu0 0
      %353 = vmatpush2.bf16.msra.mxu0 0
      %354 = vmatprep.subr.bf16.mxu0 0
      %355 = vmatpush2.bf16.msra.mxu0 0
      %356 = vmatprep.subr.bf16.mxu0 0
      %357 = vmatpush2.bf16.msra.mxu0 0
      %358 = vmatprep.subr.bf16.mxu0 0
      %359 = vmatpush2.bf16.msra.mxu0 0
      %360 = vmatprep.mubr.bf16.mxu0 0
      %361 = vmatmul.mubr.bf16.gmra.mxu0 %v285
      %v362 = vpop.f32.mrf.mxu0
      %v363 = vadd.f32 0.0, %v362
      %v364 = vpop.f32.mrf.mxu0
      %v365 = vadd.f32 0.0, %v364
      %v366 = vpop.f32.mrf.mxu0
      %v367 = vpop.f32.mrf.mxu0
      %368 = vdwg.mxu0
      %v369 = vstv %s75
      %v370 = vmul.f32 %v369, %v80
      %v371 = vmul.f32 %v369, %v81
      %v372 = vmul.f32 %v369, %v82
      %v373 = vmul.f32 %v369, %v83
      %v374 = vstv %s77
      %v375 = vmul.f32 %v374, %v322
      %v376 = vmul.f32 %v374, %v324
      %v377 = vmul.f32 %v374, %v363
      %v378 = vmul.f32 %v374, %v365
      %v379 = vsub.f32 %v370, %v375
      %v380 = vsub.f32 %v371, %v376
      %v381 = vsub.f32 %v372, %v377
      %v382 = vsub.f32 %v373, %v378
      %s383 = smul.u32 %s70, 4
      %s384 = smul.addr %s383, 4
      %s385 = scalar_lea.vmem %s6, %s384
      %v386 = vld [vmem:[%s385] sm:$0xff]
      %v387 = vld [vmem:[%s385 + $0x8] sm:$0xff]
      %v388 = vstv %s79
      %v389 = vmul.f32 %v388, %v386
      %v390 = vmul.f32 %v388, %v387
      %v393 = vcombine.high %v389, %v389
      %v394 = vcombine.high %v390, %v390
      %v397 = vadd.f32 %v379, %v389
      %v398 = vadd.f32 %v380, %v393
      %v399 = vadd.f32 %v381, %v390
      %v400 = vadd.f32 %v382, %v394
      %401 = vst [vmem:[#allocation2] sm:$0xf] %v397
      %402 = vst [vmem:[#allocation2 + $0x8] sm:$0xf] %v398
      %403 = vst [vmem:[#allocation2 + $0x10] sm:$0xf] %v399
      %404 = vst [vmem:[#allocation2 + $0x18] sm:$0xf] %v400
      %p405 = scmp.eq.s32.totalorder %s70, 7
      // Predicated region
      $region41: #{tpu_custom_call.1} parent=37 // pred_check
        %p406 = pneg %p405
      $region42: #{tpu_custom_call.1} parent=37 // pred_check_branch
        %408 = sbr.rel (%p406) target = $region44
      $region43: #{tpu_custom_call.1} parent=37 // pred_region
        %v413 = vcombine.high %v322, %v324
        %v414 = vcombine.high %v363, %v365
        %v416 = vunpack.c.l.s4 1983009808
        %v417 = vunpack.c.0.s8 %v416
        %v418 = vlaneseq
        %v419 = vshrl.u32 %v418, 7
        %v420 = vsub.s32 %v417, %v419
        %v421 = vrot.slane %v413, %v420
        %v423 = vunpack.c.l.s4 1983009808
        %v424 = vunpack.c.0.s8 %v423
        %v425 = vlaneseq
        %v426 = vshrl.u32 %v425, 7
        %v427 = vsub.s32 %v424, %v426
        %v428 = vrot.slane %v414, %v427
        %v429 = vcombine.low %v421, %v428
        %431 = vst [vmem:[#allocation7] sm:$0xff] %v429
      $region44: #{tpu_custom_call.1} parent=37 // pred_fallthru
        _
    $region38: #{tpu_custom_call.1} parent=1 // loop_footer
      %s74 = sadd.s32 1, %s70
    $region39: #{tpu_custom_call.1} parent=1 // loop_footer_branch
      %69 = sbr.rel target = $region35
    $region40: #{tpu_custom_call.1} parent=1 // loop_exit
      _
    %v432 = vld [vmem:[#allocation2] sm:$0xf]
    %v433 = vld [vmem:[#allocation2 + $0x8] sm:$0xf]
    %v434 = vld [vmem:[#allocation2 + $0x10] sm:$0xf]
    %v435 = vld [vmem:[#allocation2 + $0x18] sm:$0xf]
    %v440 = vcombine.low %v432, %v433
    %v441 = vcombine.low %v434, %v435
    %444 = vst [vmem:[#allocation6] sm:$0xff] %v440
    %445 = vst [vmem:[#allocation6 + $0x8] sm:$0xff] %v441
    %v446 = vmax.f32 %v432, -1.0
    %v447 = vmax.f32 %v433, -1.0
    %v448 = vmax.f32 %v434, -1.0
    %v449 = vmax.f32 %v435, -1.0
    %v450 = vmin.f32 %v446, 1.0
    %v451 = vmin.f32 %v447, 1.0
    %v452 = vmin.f32 %v448, 1.0
    %v453 = vmin.f32 %v449, 1.0
    %v454 = vadd.f32 %v450, 1.0
    %v455 = vadd.f32 %v451, 1.0
    %v456 = vadd.f32 %v452, 1.0
    %v457 = vadd.f32 %v453, 1.0
    %v458 = vmul.f32 %v454, 0.5
    %v459 = vmul.f32 %v455, 0.5
    %v460 = vmul.f32 %v456, 0.5
    %v461 = vmul.f32 %v457, 0.5
    %v466 = vcombine.low %v458, %v459
    %v467 = vcombine.low %v460, %v461
    %470 = vst [vmem:[#allocation9] sm:$0xff] %v466
    %471 = vst [vmem:[#allocation9 + $0x8] sm:$0xff] %v467
    // Predicated region
    $region45: #{tpu_custom_call.1} parent=1 // pred_check
      _
    $region46: #{tpu_custom_call.1} parent=1 // pred_check_branch
      %473 = sbr.rel (0) target = $region48
    $region47: #{tpu_custom_call.1} parent=1 // pred_region
      %s475 = ssub.s32 256, 256
      %476 = vsyncadd [#allocation4], %s475
      %s478 = sshll.u32 [#allocation6], 4
      %s479 = int_to_ptr.vmem [resolvable:$true] %s478
      %481 = dma.vmem_to_hbm [thread:$0]  %s479, 256, %s7, [#allocation4]
    $region48: #{tpu_custom_call.1} parent=1 // pred_fallthru
      _
    // Predicated region
    $region49: #{tpu_custom_call.1} parent=1 // pred_check
      _
    $region50: #{tpu_custom_call.1} parent=1 // pred_check_branch
      %483 = sbr.rel (0) target = $region52
    $region51: #{tpu_custom_call.1} parent=1 // pred_region
      %s485 = ssub.s32 128, 128
      %486 = vsyncadd [#allocation8], %s485
      %s488 = sshll.u32 [#allocation7], 4
      %s489 = int_to_ptr.vmem [resolvable:$true] %s488
      %491 = dma.vmem_to_hbm [thread:$0]  %s489, 128, %s8, [#allocation8]
    $region52: #{tpu_custom_call.1} parent=1 // pred_fallthru
      _
    // Predicated region
    $region53: #{tpu_custom_call.1} parent=1 // pred_check
      _
    $region54: #{tpu_custom_call.1} parent=1 // pred_check_branch
      %493 = sbr.rel (0) target = $region56
    $region55: #{tpu_custom_call.1} parent=1 // pred_region
      %s495 = ssub.s32 256, 256
      %496 = vsyncadd [#allocation8], %s495
      %s498 = sshll.u32 [#allocation9], 4
      %s499 = int_to_ptr.vmem [resolvable:$true] %s498
      %501 = dma.vmem_to_hbm [thread:$0]  %s499, 256, %s9, [#allocation8]
    $region56: #{tpu_custom_call.1} parent=1 // pred_fallthru
      _
    // Predicated region
    $region57: #{tpu_custom_call.1} parent=1 // pred_check
      _
    $region58: #{tpu_custom_call.1} parent=1 // pred_check_branch
      %503 = sbr.rel (0) target = $region60
    $region59: #{tpu_custom_call.1} parent=1 // pred_region
      %504 = dma.done [#allocation4], 256
    $region60: #{tpu_custom_call.1} parent=1 // pred_fallthru
      _
    // Predicated region
    $region61: #{tpu_custom_call.1} parent=1 // pred_check
      _
    $region62: #{tpu_custom_call.1} parent=1 // pred_check_branch
      %506 = sbr.rel (0) target = $region64
    $region63: #{tpu_custom_call.1} parent=1 // pred_region
      %507 = dma.done [#allocation8], 128
    $region64: #{tpu_custom_call.1} parent=1 // pred_fallthru
      _
    // Predicated region
    $region65: #{tpu_custom_call.1} parent=1 // pred_check
      _
    $region66: #{tpu_custom_call.1} parent=1 // pred_check_branch
      %509 = sbr.rel (0) target = $region68
    $region67: #{tpu_custom_call.1} parent=1 // pred_region
      %510 = dma.done [#allocation8], 256
    $region68: #{tpu_custom_call.1} parent=1 // pred_fallthru
      _
    %511 = vsyncpa [#allocation4], 1
    %512 = vsyncpa [#allocation8], 1
    %513 = vsyncpa [#allocation5], 1

</llo_original>
